<compile_context>
chip_gen: v6e
topology: v6e:2x2x1
jax: 0.10.0
libtpu: 0.0.40
codegen_flags: <defaults>
</compile_context>

<pallas_src>
import math
import functools

import jax
import jax.numpy as jnp
from jax.experimental import pallas as pl
from jax.experimental.pallas import tpu as pltpu


# ----------------------------------------------------------------------------
# Kernels
# ----------------------------------------------------------------------------

def _pe_add_kernel(x_ref, pe_ref, o_ref):
    # x_ref: (tb, tc), pe_ref: (1, tc) -- broadcasts over the row axis.
    o_ref[...] = (x_ref[...] + pe_ref[...]).astype(o_ref.dtype)


def _pe_add_dropout_kernel(seed_ref, x_ref, pe_ref, o_ref, *, threshold, scale):
    # Inverted dropout with on-chip PRNG (no HBM mask stream).
    # Unique seed per grid tile so blocks never repeat the same mask.
    step = pl.program_id(0) * pl.num_programs(1) + pl.program_id(1)
    pltpu.prng_seed(seed_ref[0] + step)
    bits = pltpu.bitcast(pltpu.prng_random_bits(x_ref.shape), jnp.uint32)
    val = x_ref[...] + pe_ref[...]
    keep = bits >= jnp.uint32(threshold)           # P(keep) = 1 - p
    o_ref[...] = jnp.where(keep, val * jnp.float32(scale),
                           jnp.zeros_like(val)).astype(o_ref.dtype)


def _pe_add_dropout_hostbits_kernel(x_ref, pe_ref, bits_ref, o_ref, *,
                                    threshold, scale):
    # Fallback for non-TPU backends / interpret mode only (pltpu.prng_* has no
    # CPU lowering): mask bits are streamed from HBM.
    val = x_ref[...] + pe_ref[...]
    keep = bits_ref[...] >= jnp.uint32(threshold)
    o_ref[...] = jnp.where(keep, val * jnp.float32(scale),
                           jnp.zeros_like(val)).astype(o_ref.dtype)


# ----------------------------------------------------------------------------
# Tiling
# ----------------------------------------------------------------------------

def _vmem_budget_bytes():
    # v5e's scoped-VMEM default is 16 MiB; v6e / v7x default to 32 MiB.
    try:
        kind = jax.devices()[0].device_kind.lower()
    except Exception:
        kind = ""
    if "v5 lite" in kind or "v5lite" in kind or "v5e" in kind:
        return 12 * 1024 * 1024
    return 24 * 1024 * 1024


def _choose_tiles(B, SD, n_streams):
    """Pick (row_block, col_block) for the (B, SD) f32 slab."""
    budget = _vmem_budget_bytes()
    # Each streamed array is double-buffered by the BlockSpec pipeline.
    max_block_bytes = max(1, budget // (2 * n_streams))

    # Column block: full width when an 8-row slab fits; otherwise tile the lane
    # axis in multiples of 128 so stores stay lane-dense and VMEM stays bounded.
    if 8 * SD * 4 <= max_block_bytes or SD % 128 != 0:
        tc = SD
        # TODO(synk): if SD is both huge and not a multiple of 128 this single
        # column block can exceed scoped VMEM; would need padded column tiles.
    else:
        tc = max(128, (max_block_bytes // (8 * 4) // 128) * 128)
        tc = min(tc, SD)

    rows_fit = max(1, max_block_bytes // (tc * 4))
    if rows_fit >= B:
        tb = B
        # v7x has 2 TensorCores: keep >= 2 parallel grid steps when B is large
        # so both cores drive HBM DMA on this mem-bound kernel.
        if pl.cdiv(SD, tc) == 1 and B >= 16:
            tb = ((pl.cdiv(B, 2) + 7) // 8) * 8
    else:
        tb = max(8, (rows_fit // 8) * 8)   # sublane-aligned row count
        tb = min(tb, B)
    return tb, tc


# ----------------------------------------------------------------------------
# Wrapper
# ----------------------------------------------------------------------------

def positional_encoding_forward(x, pe, *, p=0.1, training=False, rng_key=None,
                                donate_x=False):
    """x: (B, S, D) float32, pe: (max_len, D) float32 sinusoidal table."""
    B, S, D = x.shape
    SD = S * D

    # Lane-dense slab: D alone (e.g. 32) would waste 3/4 of every lane / vst.
    x2 = x.reshape(B, SD)
    pe2 = pe[:S, :].reshape(1, SD)

    apply_dropout = bool(training) and p > 0.0
    on_tpu = jax.default_backend() == "tpu"

    # Streams per grid step that are actually pipelined: x in + out.  pe is
    # resident (constant index_map) and dropout bits come from on-chip PRNG;
    # only the non-TPU fallback adds a third stream.
    n_streams = 3 if (apply_dropout and not on_tpu) else 2

    tb, tc = _choose_tiles(B, SD, n_streams)
    grid = (pl.cdiv(B, tb), pl.cdiv(SD, tc))

    x_spec = pl.BlockSpec((tb, tc), lambda i, j, *_: (i, j))
    pe_spec = pl.BlockSpec((1, tc), lambda i, j, *_: (0, j))   # resident over rows
    out_spec = pl.BlockSpec((tb, tc), lambda i, j, *_: (i, j))

    compiler_params = pltpu.CompilerParams(
        # Every tile is independent -> shard both axes across v7x's 2 TCs.
        dimension_semantics=("parallel", "parallel"),
    )

    if not apply_dropout:
        out = pl.pallas_call(
            _pe_add_kernel,
            out_shape=jax.ShapeDtypeStruct((B, SD), x.dtype),
            grid_spec=pltpu.PrefetchScalarGridSpec(
                num_scalar_prefetch=0,
                grid=grid,
                in_specs=[x_spec, pe_spec],
                out_specs=out_spec,
            ),
            compiler_params=compiler_params,
            input_output_aliases=({0: 0} if donate_x else {}),
        )(x2, pe2)
        return out.reshape(B, S, D)

    if rng_key is None:
        raise ValueError("training=True requires an explicit rng_key")

    threshold = min(int(round(p * (1 << 32))), (1 << 32) - 1)
    scale = 1.0 / (1.0 - p)

    if on_tpu:
        # Scalar seed via SMEM scalar-prefetch; per-tile reseed happens in-kernel.
        seed = jax.random.randint(rng_key, (1,), 0, jnp.iinfo(jnp.int32).max,
                                  dtype=jnp.int32)
        kernel = functools.partial(_pe_add_dropout_kernel,
                                   threshold=threshold, scale=scale)
        out = pl.pallas_call(
            kernel,
            out_shape=jax.ShapeDtypeStruct((B, SD), x.dtype),
            grid_spec=pltpu.PrefetchScalarGridSpec(
                num_scalar_prefetch=1,
                grid=grid,
                in_specs=[x_spec, pe_spec],
                out_specs=out_spec,
            ),
            compiler_params=compiler_params,
        )(seed, x2, pe2)
    else:
        # TODO(synk): pltpu.prng_* has no CPU/interpret lowering; only on
        # non-TPU backends do we stream host-generated mask bits from HBM.
        bits = jax.random.bits(rng_key, (B, SD), dtype=jnp.uint32)
        bits_spec = pl.BlockSpec((tb, tc), lambda i, j, *_: (i, j))
        kernel = functools.partial(_pe_add_dropout_hostbits_kernel,
                                   threshold=threshold, scale=scale)
        out = pl.pallas_call(
            kernel,
            out_shape=jax.ShapeDtypeStruct((B, SD), x.dtype),
            grid_spec=pltpu.PrefetchScalarGridSpec(
                num_scalar_prefetch=0,
                grid=grid,
                in_specs=[x_spec, pe_spec, bits_spec],
                out_specs=out_spec,
            ),
            compiler_params=compiler_params,
        )(x2, pe2, bits)

    return out.reshape(B, S, D)


def build_pe_table(d_model, max_len=81):
    """Deterministic sinusoidal table exactly as in the module's __init__.

    Note: like the PyTorch module, this assumes an even d_model.
    """
    position = jnp.arange(max_len, dtype=jnp.float32)[:, None]          # (max_len, 1)
    div_term = jnp.exp(
        jnp.arange(0, d_model, 2, dtype=jnp.float32) * (-math.log(81.0) / d_model)
    )                                                                    # (d_model/2,)
    pe = jnp.zeros((max_len, d_model), dtype=jnp.float32)
    pe = pe.at[:, 0::2].set(jnp.sin(position * div_term))
    pe = pe.at[:, 1::2].set(jnp.cos(position * div_term))
    return pe


if __name__ == "__main__":
    B, S, D = 2, 8, 32
    max_len = 81
    p = 0.1

    key = jax.random.PRNGKey(0)
    kx, kdrop = jax.random.split(key)
    x = jax.random.normal(kx, (B, S, D), dtype=jnp.float32)
    pe = build_pe_table(D, max_len)

    # Eval mode (dropout = identity): exact semantics of x + pe[:, :S].
    out_eval = jax.block_until_ready(
        positional_encoding_forward(x, pe, p=p, training=False))
    ref = x + pe[None, :S, :]
    assert jnp.allclose(out_eval, ref, atol=1e-6), "eval-mode mismatch"

    # Training mode: dropout path. Every output element must be either 0 or
    # the correspondingly scaled (x + pe) value.
    out_train = jax.block_until_ready(
        positional_encoding_forward(x, pe, p=p, training=True, rng_key=kdrop))
    assert out_train.shape == (B, S, D)
    scaled = ref / (1.0 - p)
    ok = jnp.all(jnp.isclose(out_train, 0.0, atol=1e-7)
                 | jnp.isclose(out_train, scaled, atol=1e-5))
    assert bool(ok), "training-mode dropout values inconsistent"

    print("KERNEL_OK")
</pallas_src>

<mosaic_0001>
module attributes {stable_mosaic.version = 11 : i64} {
  func.func @_pe_add_kernel(%arg0: i32, %arg1: i32, %arg2: memref<2x256xf32, #tpu.memory_space<vmem>>, %arg3: memref<1x256xf32, #tpu.memory_space<vmem>>, %arg4: memref<2x256xf32, #tpu.memory_space<vmem>>) attributes {dimension_semantics = [#tpu.dimension_semantics<parallel>, #tpu.dimension_semantics<parallel>], iteration_bounds = array<i64: 1, 1>, scalar_prefetch = 0 : i64, scratch_operands = 0 : i64, tpu.core_type = #tpu.core_type<tc>, window_params = [{transform_indices = @transform_0, window_bounds = array<i64: 2, 256>}, {transform_indices = @transform_1, window_bounds = array<i64: 1, 256>}, {transform_indices = @transform_2, window_bounds = array<i64: 2, 256>}]} {
    %c0 = arith.constant 0 : index
    %c0_0 = arith.constant 0 : index
    %0 = vector.load %arg2[%c0, %c0_0] : memref<2x256xf32, #tpu.memory_space<vmem>>, vector<2x256xf32>
    %c0_1 = arith.constant 0 : index
    %c0_2 = arith.constant 0 : index
    %1 = vector.load %arg3[%c0_1, %c0_2] : memref<1x256xf32, #tpu.memory_space<vmem>>, vector<1x256xf32>
    %2 = vector.broadcast %1 : vector<1x256xf32> to vector<2x256xf32>
    %3 = arith.addf %0, %2 : vector<2x256xf32>
    %c0_3 = arith.constant 0 : index
    %c0_4 = arith.constant 0 : index
    %4 = vector.load %arg4[%c0_3, %c0_4] : memref<2x256xf32, #tpu.memory_space<vmem>>, vector<2x256xf32>
    tpu.vector_store %arg4[%c0_3, %c0_4], %3 {strides = array<i32>} : memref<2x256xf32, #tpu.memory_space<vmem>>, vector<2x256xf32>,
    return
  }
  func.func @transform_0(%arg0: i32, %arg1: i32) -> (i32, i32) {
    %c0_i32 = arith.constant 0 : i32
    return %arg0, %arg1 : i32, i32
  }
  func.func @transform_1(%arg0: i32, %arg1: i32) -> (i32, i32) {
    %c0_i32 = arith.constant 0 : i32
    %c0_i32_0 = arith.constant 0 : i32
    return %c0_i32, %arg1 : i32, i32
  }
  func.func @transform_2(%arg0: i32, %arg1: i32) -> (i32, i32) {
    %c0_i32 = arith.constant 0 : i32
    return %arg0, %arg1 : i32, i32
  }
}

</mosaic_0001>

<llo_original>
// kernel: tpu_custom_call.1
$region0: #{tpu_custom_call.1}
  #allocation0 [shape = 'u32[]', space=smem, size = 0x4, offset = 0x4, fixed_abs, tag = 'smem constant byte address 0x4 - core index']
  #allocation1 [shape = 'u32[144,128]{1,0:T(1,128)}', space=vmem, size = 0x12000, scoped, tag = 'internal scratch']
  %s0 = inlined_call_operand.hbm [shape: f32[2,256], index: 0, kind: input, shape index: {}]
  %s1 = inlined_call_operand.hbm [shape: f32[1,256], index: 1, kind: input, shape index: {}]
  %s2 = inlined_call_operand.hbm [shape: f32[2,256], index: 2, kind: output, shape index: {}]
  %s3 = sld [smem:[#allocation0]]
  $region26: #{tpu_custom_call.1} parent=0
    _
  %s5 = ssub.s32 1, %s3
  %s6 = scalar_select 0, %s5, %s3
  $region1: #{tpu_custom_call.1} parent=0
    #allocation2 [shape = 'u8[2048]{0}', space=vmem, size = 0x800, scoped, tag = 'input window, operand 0, single buffered']
    #allocation3 [shape = 's32[1]{0}', space=sflag, size = 0x4, scoped, tag = 'scoped memory for tpu_custom_call.1']
    #allocation4 [shape = 's32[1]{0}', space=sflag, size = 0x4, scoped, tag = 'scoped memory for tpu_custom_call.1']
    #allocation5 [shape = 'u8[1024]{0}', space=vmem, size = 0x400, scoped, tag = 'input window, operand 1, single buffered']
    #allocation6 [shape = 's32[1]{0}', space=sflag, size = 0x4, scoped, tag = 'scoped memory for tpu_custom_call.1']
    #allocation7 [shape = 'u8[2048]{0}', space=vmem, size = 0x800, scoped, tag = 'output window, operand 0, single buffered']
    %7 = vsyncpa [#allocation3], 0
    %8 = vsyncpa [#allocation6], 0
    %9 = vsyncpa [#allocation4], 0
    // Predicated region
    $region2: #{tpu_custom_call.1} parent=1 // pred_check
      _
    $region3: #{tpu_custom_call.1} parent=1 // pred_check_branch
      %11 = sbr.rel (0) target = $region5
    $region4: #{tpu_custom_call.1} parent=1 // pred_region
      %s13 = ssub.s32 64, 64
      %14 = vsyncadd [#allocation3], %s13
      %s16 = sshll.u32 [#allocation2], 4
      %s17 = int_to_ptr.vmem [resolvable:$true] %s16
      %19 = dma.hbm_to_vmem [thread:$0]  %s0, 64, %s17, [#allocation3]
    $region5: #{tpu_custom_call.1} parent=1 // pred_fallthru
      _
    // Predicated region
    $region6: #{tpu_custom_call.1} parent=1 // pred_check
      _
    $region7: #{tpu_custom_call.1} parent=1 // pred_check_branch
      %21 = sbr.rel (0) target = $region9
    $region8: #{tpu_custom_call.1} parent=1 // pred_region
      %s23 = ssub.s32 32, 32
      %24 = vsyncadd [#allocation6], %s23
      %s26 = sshll.u32 [#allocation5], 4
      %s27 = int_to_ptr.vmem [resolvable:$true] %s26
      %29 = dma.hbm_to_vmem [thread:$0]  %s1, 32, %s27, [#allocation6]
    $region9: #{tpu_custom_call.1} parent=1 // pred_fallthru
      _
    // Predicated region
    $region10: #{tpu_custom_call.1} parent=1 // pred_check
      _
    $region11: #{tpu_custom_call.1} parent=1 // pred_check_branch
      %31 = sbr.rel (0) target = $region13
    $region12: #{tpu_custom_call.1} parent=1 // pred_region
      %32 = dma.done [#allocation3], 64
    $region13: #{tpu_custom_call.1} parent=1 // pred_fallthru
      _
    // Predicated region
    $region14: #{tpu_custom_call.1} parent=1 // pred_check
      _
    $region15: #{tpu_custom_call.1} parent=1 // pred_check_branch
      %34 = sbr.rel (0) target = $region17
    $region16: #{tpu_custom_call.1} parent=1 // pred_region
      %35 = dma.done [#allocation6], 32
    $region17: #{tpu_custom_call.1} parent=1 // pred_fallthru
      _
    %v36 = vld [vmem:[#allocation2] sm:$0xf]
    %v37 = vld [vmem:[#allocation5] sm:$0x3]
    %v39 = vlaneseq
    %v40 = vshrl.u32 %v39, 7
    %v41 = vsub.s32 0, %v40
    %v42 = vrot.slane %v37, %v41
    %v43 = vlaneseq
    %v44 = vshrl.u32 %v43, 7
    %v45 = vsub.s32 1, %v44
    %v46 = vrot.slane %v37, %v45
    %v47 = vcombine.low %v42, %v46
    %v49 = vunpack.c.l.s4 1983009808
    %v50 = vunpack.c.0.s8 %v49
    %v51 = vlaneseq
    %v52 = vshrl.u32 %v51, 7
    %v53 = vsub.s32 %v50, %v52
    %v54 = vrot.slane %v47, %v53
    %v56 = vadd.f32 %v36, %v54
    %57 = vst [vmem:[#allocation7] sm:$0xf] %v56
    // Predicated region
    $region18: #{tpu_custom_call.1} parent=1 // pred_check
      _
    $region19: #{tpu_custom_call.1} parent=1 // pred_check_branch
      %59 = sbr.rel (0) target = $region21
    $region20: #{tpu_custom_call.1} parent=1 // pred_region
      %s61 = ssub.s32 64, 64
      %62 = vsyncadd [#allocation4], %s61
      %s64 = sshll.u32 [#allocation7], 4
      %s65 = int_to_ptr.vmem [resolvable:$true] %s64
      %67 = dma.vmem_to_hbm [thread:$0]  %s65, 64, %s2, [#allocation4]
    $region21: #{tpu_custom_call.1} parent=1 // pred_fallthru
      _
    // Predicated region
    $region22: #{tpu_custom_call.1} parent=1 // pred_check
      _
    $region23: #{tpu_custom_call.1} parent=1 // pred_check_branch
      %69 = sbr.rel (0) target = $region25
    $region24: #{tpu_custom_call.1} parent=1 // pred_region
      %70 = dma.done [#allocation4], 64
    $region25: #{tpu_custom_call.1} parent=1 // pred_fallthru
      _
    %71 = vsyncpa [#allocation3], 1
    %72 = vsyncpa [#allocation6], 1
    %73 = vsyncpa [#allocation4], 1

</llo_original>
